<compile_context>
chip_gen: v5e
topology: v5e:2x2
jax: 0.10.0
libtpu: 0.0.40
codegen_flags: <defaults>
</compile_context>

<pallas_src>
import functools

import jax
import jax.numpy as jnp
from jax.experimental import pallas as pl
from jax.experimental.pallas import tpu as pltpu


# ----------------------------- kernels --------------------------------------


def _gate_kernel(x_ref, wv_wt_ref, wv_b_ref, wq_w_ref, wq_b_ref,
                 g_ref, off_ref, acc_ref, *, inv_hw):
    """Pass 1: accumulate spatial sum of x; on last HW tile compute gate vec."""
    t = pl.program_id(1)

    @pl.when(t == 0)
    def _():
        acc_ref[...] = jnp.zeros_like(acc_ref)

    x = x_ref[0].astype(jnp.float32)                         # (C, T)
    acc_ref[...] += jnp.sum(x, axis=-1, keepdims=True)       # (C, 1)

    @pl.when(t == pl.num_programs(1) - 1)
    def _():
        x_mean = acc_ref[...] * inv_hw                       # (C, 1)
        # wq_pool = Wq @ mean(x) + bq   (mean folded through the 1x1 conv)
        wq_pool = (jnp.dot(wq_w_ref[...].astype(jnp.float32), x_mean,
                           preferred_element_type=jnp.float32)
                   + wq_b_ref[...].astype(jnp.float32))      # (C//2, 1)
        # effective gate vector: g = Wv^T @ wq_pool ; offset = wq_pool . bv
        g = jnp.dot(wv_wt_ref[...].astype(jnp.float32), wq_pool,
                    preferred_element_type=jnp.float32)      # (C, 1)
        off = jnp.sum(wq_pool * wv_b_ref[...].astype(jnp.float32),
                      keepdims=True)                         # (1, 1)
        g_ref[0] = g
        off_ref[0] = off


def _apply_kernel(x_ref, g_ref, off_ref, o_ref):
    """Pass 2: wz = g . x + off ; out = sigmoid(wz) * x   (per HW tile)."""
    x = x_ref[0].astype(jnp.float32)                         # (C, T)
    g = g_ref[0]                                             # (C, 1) f32
    off = off_ref[0]                                         # (1, 1) f32
    wz = jnp.sum(g * x, axis=0, keepdims=True) + off         # (1, T)
    weight = jax.nn.sigmoid(wz)                              # (1, T)
    o_ref[0] = (weight * x).astype(o_ref.dtype)              # (C, T)


# ----------------------------- wrapper ---------------------------------------


def _pick_hw_tile(hw_pad, c, itemsize):
    """Largest lane-dense tile (multiple of 128) dividing hw_pad, ~few MiB."""
    budget = 8 * 1024 * 1024  # in + out block bytes (single buffer)
    for t in (4096, 2048, 1024, 512, 256, 128):
        if hw_pad % t == 0 and 2 * c * t * itemsize <= budget:
            return t
    return 128


def _vmem_limit_bytes(c, c2, tile, itemsize):
    # double-buffered x in + out blocks + small weights/gate/scratch + headroom
    need = 4 * c * tile * itemsize + 4 * (2 * c2 * c + 2 * c2 + 2 * c) * 4
    need += 2 * 1024 * 1024
    return int(min(64 * 1024 * 1024, max(8 * 1024 * 1024, 2 * need)))


def spatial_only_branch(x_nchw, wv_w, wv_b, wq_w, wq_b):
    b, c, h, w = x_nchw.shape
    c2 = c // 2
    hw = h * w
    dtype = x_nchw.dtype
    itemsize = jnp.dtype(dtype).itemsize

    # flatten spatial onto the lane axis and pad to a multiple of 128 lanes
    hw_pad = ((hw + 127) // 128) * 128
    x_flat = x_nchw.reshape(b, c, hw)
    if hw_pad != hw:
        x_flat = jnp.pad(x_flat, ((0, 0), (0, 0), (0, hw_pad - hw)))

    tile = _pick_hw_tile(hw_pad, c, itemsize)
    n_tiles = hw_pad // tile
    vmem_limit = _vmem_limit_bytes(c, c2, tile, itemsize)

    # 1x1 conv weights as plain matrices (Wv transposed for the gate fold)
    wv_wt = wv_w.reshape(c2, c).T          # (C, C//2)
    wq_w2 = wq_w.reshape(c2, c)            # (C//2, C)
    wv_b2 = wv_b.reshape(c2, 1)
    wq_b2 = wq_b.reshape(c2, 1)

    # -------- pass 1: per-batch gate vector + offset --------
    g, off = pl.pallas_call(
        functools.partial(_gate_kernel, inv_hw=float(1.0 / hw)),
        out_shape=(jax.ShapeDtypeStruct((b, c, 1), jnp.float32),
                   jax.ShapeDtypeStruct((b, 1, 1), jnp.float32)),
        grid=(b, n_tiles),
        in_specs=[
            pl.BlockSpec((1, c, tile), lambda i, t: (i, 0, t)),
            pl.BlockSpec((c, c2), lambda i, t: (0, 0)),
            pl.BlockSpec((c2, 1), lambda i, t: (0, 0)),
            pl.BlockSpec((c2, c), lambda i, t: (0, 0)),
            pl.BlockSpec((c2, 1), lambda i, t: (0, 0)),
        ],
        out_specs=(
            pl.BlockSpec((1, c, 1), lambda i, t: (i, 0, 0)),
            pl.BlockSpec((1, 1, 1), lambda i, t: (i, 0, 0)),
        ),
        scratch_shapes=[pltpu.VMEM((c, 1), jnp.float32)],
        compiler_params=pltpu.CompilerParams(
            dimension_semantics=("parallel", "arbitrary"),
            vmem_limit_bytes=vmem_limit),
    )(x_flat, wv_wt, wv_b2, wq_w2, wq_b2)

    # -------- pass 2: apply sigmoid spatial gate, fully parallel over (b, t) --
    out_flat = pl.pallas_call(
        _apply_kernel,
        out_shape=jax.ShapeDtypeStruct((b, c, hw_pad), dtype),
        grid=(b, n_tiles),
        in_specs=[
            pl.BlockSpec((1, c, tile), lambda i, t: (i, 0, t)),
            pl.BlockSpec((1, c, 1), lambda i, t: (i, 0, 0)),
            pl.BlockSpec((1, 1, 1), lambda i, t: (i, 0, 0)),
        ],
        out_specs=pl.BlockSpec((1, c, tile), lambda i, t: (i, 0, t)),
        compiler_params=pltpu.CompilerParams(
            dimension_semantics=("parallel", "parallel"),
            vmem_limit_bytes=vmem_limit),
    )(x_flat, g, off)

    if hw_pad != hw:
        out_flat = out_flat[:, :, :hw]
    return out_flat.reshape(b, c, h, w)


# ----------------------------- reference -------------------------------------


def spatial_only_branch_ref(x_nchw, wv_w, wv_b, wq_w, wq_b):
    """Pure-JAX reference mirroring the PyTorch forward exactly (f32)."""
    x_nchw = x_nchw.astype(jnp.float32)
    b, c, h, w = x_nchw.shape
    c2 = c // 2
    x_flat = x_nchw.reshape(b, c, h * w)
    wv = (jnp.einsum("oc,bcs->bos", wv_w.reshape(c2, c).astype(jnp.float32), x_flat)
          + wv_b.reshape(1, c2, 1).astype(jnp.float32))
    wq = (jnp.einsum("oc,bcs->bos", wq_w.reshape(c2, c).astype(jnp.float32), x_flat)
          + wq_b.reshape(1, c2, 1).astype(jnp.float32))
    wq_pool = jnp.mean(wq, axis=-1)                       # (b, c2)
    wz = jnp.einsum("bo,bos->bs", wq_pool, wv)            # (b, h*w)
    weight = jax.nn.sigmoid(wz).reshape(b, 1, h, w)
    return weight * x_nchw


# ----------------------------- test ------------------------------------------


if __name__ == "__main__":
    key = jax.random.PRNGKey(0)
    kx, kwv, kbv, kwq, kbq = jax.random.split(key, 5)

    # Case 1: small canonical shape, f32
    B, C, H, W = 2, 4, 16, 16
    x = jax.random.normal(kx, (B, C, H, W), dtype=jnp.float32)
    wv_w = jax.random.normal(kwv, (C // 2, C, 1, 1), dtype=jnp.float32) * 0.1
    wv_b = jax.random.normal(kbv, (C // 2,), dtype=jnp.float32) * 0.1
    wq_w = jax.random.normal(kwq, (C // 2, C, 1, 1), dtype=jnp.float32) * 0.1
    wq_b = jax.random.normal(kbq, (C // 2,), dtype=jnp.float32) * 0.1

    out = jax.block_until_ready(spatial_only_branch(x, wv_w, wv_b, wq_w, wq_b))
    ref = spatial_only_branch_ref(x, wv_w, wv_b, wq_w, wq_b)
    assert out.shape == (B, C, H, W) and out.dtype == x.dtype
    assert jnp.allclose(out, ref, atol=1e-5, rtol=1e-5)

    # Case 2: spatial size not a multiple of 128 (exercises lane padding path)
    B2, C2, H2, W2 = 1, 8, 10, 13
    x2 = jax.random.normal(kx, (B2, C2, H2, W2), dtype=jnp.float32)
    wv_w2 = jax.random.normal(kwv, (C2 // 2, C2, 1, 1), dtype=jnp.float32) * 0.1
    wv_b2 = jax.random.normal(kbv, (C2 // 2,), dtype=jnp.float32) * 0.1
    wq_w2 = jax.random.normal(kwq, (C2 // 2, C2, 1, 1), dtype=jnp.float32) * 0.1
    wq_b2 = jax.random.normal(kbq, (C2 // 2,), dtype=jnp.float32) * 0.1
    out2 = jax.block_until_ready(
        spatial_only_branch(x2, wv_w2, wv_b2, wq_w2, wq_b2))
    ref2 = spatial_only_branch_ref(x2, wv_w2, wv_b2, wq_w2, wq_b2)
    assert out2.shape == x2.shape
    assert jnp.allclose(out2, ref2, atol=1e-5, rtol=1e-5)

    # Case 3: bf16 end-to-end (no f32 up-cast of the big tensor in the wrapper)
    xb = x.astype(jnp.bfloat16)
    outb = jax.block_until_ready(
        spatial_only_branch(xb,
                            wv_w.astype(jnp.bfloat16), wv_b.astype(jnp.bfloat16),
                            wq_w.astype(jnp.bfloat16), wq_b.astype(jnp.bfloat16)))
    assert outb.shape == (B, C, H, W) and outb.dtype == jnp.bfloat16
    assert jnp.allclose(outb.astype(jnp.float32), ref, atol=0.12, rtol=0.05)

    print("KERNEL_OK")
</pallas_src>

<mosaic_0001>
module attributes {stable_mosaic.version = 11 : i64} {
  func.func @_gate_kernel(%arg0: i32, %arg1: i32, %arg2: memref<1x4x256xf32, #tpu.memory_space<vmem>>, %arg3: memref<4x2xf32, #tpu.memory_space<vmem>>, %arg4: memref<2x1xf32, #tpu.memory_space<vmem>>, %arg5: memref<2x4xf32, #tpu.memory_space<vmem>>, %arg6: memref<2x1xf32, #tpu.memory_space<vmem>>, %arg7: memref<1x4x1xf32, #tpu.memory_space<vmem>>, %arg8: memref<1x1x1xf32, #tpu.memory_space<vmem>>, %arg9: memref<4x1xf32, #tpu.memory_space<vmem>>) attributes {dimension_semantics = [#tpu.dimension_semantics<parallel>, #tpu.dimension_semantics<arbitrary>], iteration_bounds = array<i64: 2, 1>, scalar_prefetch = 0 : i64, scratch_operands = 1 : i64, tpu.core_type = #tpu.core_type<tc>, window_params = [{transform_indices = @transform_0, window_bounds = array<i64: 1, 4, 256>}, {pipeline_mode = #tpu.pipeline_mode<synchronous>, transform_indices = @transform_1, window_bounds = array<i64: 4, 2>}, {pipeline_mode = #tpu.pipeline_mode<synchronous>, transform_indices = @transform_2, window_bounds = array<i64: 2, 1>}, {pipeline_mode = #tpu.pipeline_mode<synchronous>, transform_indices = @transform_3, window_bounds = array<i64: 2, 4>}, {pipeline_mode = #tpu.pipeline_mode<synchronous>, transform_indices = @transform_4, window_bounds = array<i64: 2, 1>}, {transform_indices = @transform_5, window_bounds = array<i64: 1, 4, 1>}, {transform_indices = @transform_6, window_bounds = array<i64: 1, 1, 1>}]} {
    %c0_i32 = arith.constant 0 : i32
    %0 = arith.cmpi eq, %arg1, %c0_i32 : i32
    %1 = arith.extui %0 : i1 to i32
    %c0_i32_0 = arith.constant 0 : i32
    %2 = arith.cmpi ne, %1, %c0_i32_0 : i32
    scf.if %2 {
      %cst_9 = arith.constant 0.000000e+00 : f32
      %13 = vector.broadcast %cst_9 : f32 to vector<4x1xf32>
      %c0_10 = arith.constant 0 : index
      %c0_11 = arith.constant 0 : index
      %14 = vector.load %arg9[%c0_10, %c0_11] : memref<4x1xf32, #tpu.memory_space<vmem>>, vector<4x1xf32>
      tpu.vector_store %arg9[%c0_10, %c0_11], %13 {strides = array<i32>} : memref<4x1xf32, #tpu.memory_space<vmem>>, vector<4x1xf32>,
    } else {
    }
    %c0 = arith.constant 0 : index
    %c0_1 = arith.constant 0 : index
    %c0_2 = arith.constant 0 : index
    %3 = vector.load %arg2[%c0, %c0_1, %c0_2] : memref<1x4x256xf32, #tpu.memory_space<vmem>>, vector<1x4x256xf32>
    %4 = vector.shape_cast %3 : vector<1x4x256xf32> to vector<4x256xf32>
    %c0_3 = arith.constant 0 : index
    %c0_4 = arith.constant 0 : index
    %5 = vector.load %arg9[%c0_3, %c0_4] : memref<4x1xf32, #tpu.memory_space<vmem>>, vector<4x1xf32>
    %cst = arith.constant dense<0.000000e+00> : vector<4xf32>
    %6 = vector.multi_reduction <add>, %4, %cst [1] : vector<4x256xf32> to vector<4xf32>
    %7 = vector.shape_cast %6 : vector<4xf32> to vector<4x1xf32>
    %8 = arith.addf %5, %7 : vector<4x1xf32>
    %c0_5 = arith.constant 0 : index
    %c0_6 = arith.constant 0 : index
    %9 = vector.load %arg9[%c0_5, %c0_6] : memref<4x1xf32, #tpu.memory_space<vmem>>, vector<4x1xf32>
    tpu.vector_store %arg9[%c0_5, %c0_6], %8 {strides = array<i32>} : memref<4x1xf32, #tpu.memory_space<vmem>>, vector<4x1xf32>,
    %c0_i32_7 = arith.constant 0 : i32
    %10 = arith.cmpi eq, %arg1, %c0_i32_7 : i32
    %11 = arith.extui %10 : i1 to i32
    %c0_i32_8 = arith.constant 0 : i32
    %12 = arith.cmpi ne, %11, %c0_i32_8 : i32
    scf.if %12 {
      %c0_9 = arith.constant 0 : index
      %c0_10 = arith.constant 0 : index
      %13 = vector.load %arg9[%c0_9, %c0_10] : memref<4x1xf32, #tpu.memory_space<vmem>>, vector<4x1xf32>
      %cst_11 = arith.constant 3.906250e-03 : f32
      %14 = vector.broadcast %cst_11 : f32 to vector<4x1xf32>
      %15 = arith.mulf %13, %14 : vector<4x1xf32>
      %c0_12 = arith.constant 0 : index
      %c0_13 = arith.constant 0 : index
      %16 = vector.load %arg5[%c0_12, %c0_13] : memref<2x4xf32, #tpu.memory_space<vmem>>, vector<2x4xf32>
      %cst_14 = arith.constant dense<0.000000e+00> : vector<2x1xf32>
      %17 = tpu.matmul %16, %15, %cst_14 {dimension_numbers = #tpu.dot_dimension_numbers<[1], [0], [0], [1], [0, 0, 1, 1], [], []>} : vector<2x4xf32>, vector<4x1xf32>, vector<2x1xf32> -> vector<2x1xf32>
      %c0_15 = arith.constant 0 : index
      %c0_16 = arith.constant 0 : index
      %18 = vector.load %arg6[%c0_15, %c0_16] : memref<2x1xf32, #tpu.memory_space<vmem>>, vector<2x1xf32>
      %19 = arith.addf %17, %18 : vector<2x1xf32>
      %c0_17 = arith.constant 0 : index
      %c0_18 = arith.constant 0 : index
      %20 = vector.load %arg3[%c0_17, %c0_18] : memref<4x2xf32, #tpu.memory_space<vmem>>, vector<4x2xf32>
      %cst_19 = arith.constant dense<0.000000e+00> : vector<4x1xf32>
      %21 = tpu.matmul %20, %19, %cst_19 {dimension_numbers = #tpu.dot_dimension_numbers<[1], [0], [0], [1], [0, 0, 1, 1], [], []>} : vector<4x2xf32>, vector<2x1xf32>, vector<4x1xf32> -> vector<4x1xf32>
      %c0_20 = arith.constant 0 : index
      %c0_21 = arith.constant 0 : index
      %22 = vector.load %arg4[%c0_20, %c0_21] : memref<2x1xf32, #tpu.memory_space<vmem>>, vector<2x1xf32>
      %23 = arith.mulf %19, %22 : vector<2x1xf32>
      %24 = vector.shape_cast %23 : vector<2x1xf32> to vector<1x2x1xf32>
      %cst_22 = arith.constant dense<0.000000e+00> : vector<1xf32>
      %25 = vector.multi_reduction <add>, %24, %cst_22 [1, 2] : vector<1x2x1xf32> to vector<1xf32>
      %26 = vector.shape_cast %25 : vector<1xf32> to vector<1x1x1xf32>
      %27 = vector.extract %26[0, 0, 0] : f32 from vector<1x1x1xf32>
      %28 = vector.broadcast %27 : f32 to vector<1x1xf32>
      %c0_23 = arith.constant 0 : index
      %c0_24 = arith.constant 0 : index
      %c0_25 = arith.constant 0 : index
      %29 = vector.load %arg7[%c0_23, %c0_24, %c0_25] : memref<1x4x1xf32, #tpu.memory_space<vmem>>, vector<1x4x1xf32>
      %30 = vector.shape_cast %29 : vector<1x4x1xf32> to vector<4x1xf32>
      %31 = vector.shape_cast %21 : vector<4x1xf32> to vector<1x4x1xf32>
      tpu.vector_store %arg7[%c0_23, %c0_24, %c0_25], %31 {strides = array<i32>} : memref<1x4x1xf32, #tpu.memory_space<vmem>>, vector<1x4x1xf32>,
      %c0_26 = arith.constant 0 : index
      %c0_27 = arith.constant 0 : index
      %c0_28 = arith.constant 0 : index
      %32 = vector.load %arg8[%c0_26, %c0_27, %c0_28] : memref<1x1x1xf32, #tpu.memory_space<vmem>>, vector<1x1x1xf32>
      %33 = vector.shape_cast %32 : vector<1x1x1xf32> to vector<1x1xf32>
      %34 = vector.shape_cast %28 : vector<1x1xf32> to vector<1x1x1xf32>
      tpu.vector_store %arg8[%c0_26, %c0_27, %c0_28], %34 {strides = array<i32>} : memref<1x1x1xf32, #tpu.memory_space<vmem>>, vector<1x1x1xf32>,
    } else {
    }
    return
  }
  func.func @transform_0(%arg0: i32, %arg1: i32) -> (i32, i32, i32) {
    %c0_i32 = arith.constant 0 : i32
    %c0_i32_0 = arith.constant 0 : i32
    return %arg0, %c0_i32, %arg1 : i32, i32, i32
  }
  func.func @transform_1(%arg0: i32, %arg1: i32) -> (i32, i32) {
    %c0_i32 = arith.constant 0 : i32
    %c0_i32_0 = arith.constant 0 : i32
    %c0_i32_1 = arith.constant 0 : i32
    return %c0_i32, %c0_i32_0 : i32, i32
  }
  func.func @transform_2(%arg0: i32, %arg1: i32) -> (i32, i32) {
    %c0_i32 = arith.constant 0 : i32
    %c0_i32_0 = arith.constant 0 : i32
    %c0_i32_1 = arith.constant 0 : i32
    return %c0_i32, %c0_i32_0 : i32, i32
  }
  func.func @transform_3(%arg0: i32, %arg1: i32) -> (i32, i32) {
    %c0_i32 = arith.constant 0 : i32
    %c0_i32_0 = arith.constant 0 : i32
    %c0_i32_1 = arith.constant 0 : i32
    return %c0_i32, %c0_i32_0 : i32, i32
  }
  func.func @transform_4(%arg0: i32, %arg1: i32) -> (i32, i32) {
    %c0_i32 = arith.constant 0 : i32
    %c0_i32_0 = arith.constant 0 : i32
    %c0_i32_1 = arith.constant 0 : i32
    return %c0_i32, %c0_i32_0 : i32, i32
  }
  func.func @transform_5(%arg0: i32, %arg1: i32) -> (i32, i32, i32) {
    %c0_i32 = arith.constant 0 : i32
    %c0_i32_0 = arith.constant 0 : i32
    %c0_i32_1 = arith.constant 0 : i32
    return %arg0, %c0_i32, %c0_i32_0 : i32, i32, i32
  }
  func.func @transform_6(%arg0: i32, %arg1: i32) -> (i32, i32, i32) {
    %c0_i32 = arith.constant 0 : i32
    %c0_i32_0 = arith.constant 0 : i32
    %c0_i32_1 = arith.constant 0 : i32
    return %arg0, %c0_i32, %c0_i32_0 : i32, i32, i32
  }
}

</mosaic_0001>

<llo_original>
// kernel: tpu_custom_call.1
$region0: #{tpu_custom_call.1}
  #allocation0 [shape = 'u32[]', space=smem, size = 0x4, offset = 0x4, fixed_abs, tag = 'smem constant byte address 0x4 - core index']
  #allocation1 [shape = 'u32[72,128]{1,0:T(1,128)}', space=vmem, size = 0x9000, scoped, tag = 'internal scratch']
  #allocation2 [shape = 'f32[4,1]{1,0:T(4,128)}', space=vmem, size = 0x800, scoped, tag = 'scratch operand']
  %s0 = inlined_call_operand.hbm [shape: f32[2,4,256], index: 0, kind: input, shape index: {}]
  %s1 = inlined_call_operand.vmem [shape: f32[4,2], index: 1, kind: input, shape index: {}]
  %s2 = inlined_call_operand.vmem [shape: f32[2,1], index: 2, kind: input, shape index: {}]
  %s3 = inlined_call_operand.vmem [shape: f32[2,4], index: 3, kind: input, shape index: {}]
  %s4 = inlined_call_operand.vmem [shape: f32[2,1], index: 4, kind: input, shape index: {}]
  %s5 = inlined_call_operand.vmem [shape: f32[2,4,1], index: 5, kind: output, shape index: {0}]
  %s6 = inlined_call_operand.vmem [shape: f32[2,1,1], index: 6, kind: output, shape index: {1}]
  %7 = xla_tuple %s5, %s6
  %s8 = sld [smem:[#allocation0]]
  $region73: #{tpu_custom_call.1} parent=0
    _
  %s10 = ssub.s32 1, %s8
  %s11 = scalar_select 0, %s10, %s8
  $region1: #{tpu_custom_call.1} parent=0
    #allocation3 [shape = 'u8[8192]{0}', space=vmem, size = 0x2000, scoped, tag = 'input window, operand 0']
    #allocation4 [shape = 's32[2]{0}', space=sflag, size = 0x8, scoped, tag = 'scoped memory for tpu_custom_call.1']
    %12 = vsyncpa [#allocation4], 0
    %s13 = scalar_lea.sflag [#allocation4], 1
    %14 = vsyncpa %s13, 0
    loop: start=0, step=1, limit=4
    $region2: #{tpu_custom_call.1} parent=1 // loop_pre_header
      _
    $region3: #{tpu_custom_call.1} parent=1 // loop_header
      %s16 = sphi 0, %s20
      %p17 = scmp.ge.s32.totalorder %s16, 4
      %s23 = sphi 0, %s35
      %s24 = sphi 0, %s31
      %s25 = sphi 0, %s23
      %s26 = sphi 0, %s24
      %s27 = sphi 0, %s25
      %s28 = sphi 0, %s26
      %s40 = sphi 0, %s42
      %s43 = sphi 0, %s40
      %s44 = sphi 0, %s43
      %s60 = sphi 0, %s44
      %s64 = sphi 0, %s64
      %s66 = sphi 0, %s64
      %s67 = sphi 0, %s66
      %s81 = sphi 0, %s67
      %s85 = sphi 0, %s85
      %s87 = sphi 0, %s85
      %s88 = sphi 0, %s87
      %s102 = sphi 0, %s88
      %s106 = sphi 0, %s106
      %s108 = sphi 0, %s106
      %s109 = sphi 0, %s108
      %s123 = sphi 0, %s109
      %s127 = sphi 0, %s127
      %s129 = sphi 0, %s127
      %s130 = sphi 0, %s129
      %s144 = sphi 0, %s130
      %s150 = sphi 0, %s152
      %s153 = sphi 0, %s150
      %s154 = sphi 0, %s153
      %s170 = sphi 0, %s154
      %s176 = sphi 0, %s178
      %s179 = sphi 0, %s176
      %s180 = sphi 0, %s179
      %s196 = sphi 0, %s180
    $region4: #{tpu_custom_call.1} parent=1 // loop_header_branch
      %19 = sbr.rel (%p17) target = $region8
    $region5: #{tpu_custom_call.1} parent=1 // loop_body
      %s21 = ssub.s32 %s16, 1
      %s22 = ssub.s32 %s16, 2
      %s29 = sadd.s32 1, %s24
      %p30 = scmp.ge.s32.totalorder %s29, 1
      %s31 = scalar_select %p30, 0, %s29
      %s32 = sadd.s32 1, %s23
      %s33 = scalar_select %p30, %s32, %s23
      %p34 = scmp.ge.s32.totalorder %s33, 2
      %s35 = scalar_select %p34, 0, %s33
      %s36 = ssub.s32 %s23, %s35
      %s37 = ssub.s32 %s24, %s31
      %s38 = sor.u32 %s36, %s37
      %p39 = scmp.eq.s32.totalorder %s38, 0
      %s41 = sadd.s32 %s40, 1
      %s42 = scalar_select %p39, %s40, %s41
      %p45 = pneg %p39
      %p46 = scmp.eq.s32.totalorder %s16, 1
      %p47 = por %p45, %p46
      %p48 = scmp.ne.s32.totalorder %s40, %s43
      %p49 = scmp.eq.s32.totalorder %s16, 0
      %p50 = por %p48, %p49
      %p51 = scmp.ne.s32.totalorder %s40, %s43
      %p52 = scmp.eq.s32.totalorder %s21, 1
      %p53 = por %p51, %p52
      %p54 = scmp.ne.s32.totalorder %s43, %s44
      %p55 = scmp.eq.s32.totalorder %s21, 0
      %p56 = por %p54, %p55
      %p57 = scmp.ne.s32.totalorder %s43, %s44
      %p58 = scmp.eq.s32.totalorder %s22, 1
      %p59 = por %p57, %p58
      %p61 = scmp.ne.s32.totalorder %s44, %s60
      %p62 = scmp.eq.s32.totalorder %s22, 0
      %p63 = por %p61, %p62
      %s65 = sadd.s32 %s64, 1
      %p68 = scmp.eq.s32.totalorder %s16, 1
      %p69 = scmp.ne.s32.totalorder %s64, %s66
      %p70 = scmp.eq.s32.totalorder %s16, 0
      %p71 = por %p69, %p70
      %p72 = scmp.ne.s32.totalorder %s64, %s66
      %p73 = scmp.eq.s32.totalorder %s21, 1
      %p74 = por %p72, %p73
      %p75 = scmp.ne.s32.totalorder %s66, %s67
      %p76 = scmp.eq.s32.totalorder %s21, 0
      %p77 = por %p75, %p76
      %p78 = scmp.ne.s32.totalorder %s66, %s67
      %p79 = scmp.eq.s32.totalorder %s22, 1
      %p80 = por %p78, %p79
      %p82 = scmp.ne.s32.totalorder %s67, %s81
      %p83 = scmp.eq.s32.totalorder %s22, 0
      %p84 = por %p82, %p83
      %s86 = sadd.s32 %s85, 1
      %p89 = scmp.eq.s32.totalorder %s16, 1
      %p90 = scmp.ne.s32.totalorder %s85, %s87
      %p91 = scmp.eq.s32.totalorder %s16, 0
      %p92 = por %p90, %p91
      %p93 = scmp.ne.s32.totalorder %s85, %s87
      %p94 = scmp.eq.s32.totalorder %s21, 1
      %p95 = por %p93, %p94
      %p96 = scmp.ne.s32.totalorder %s87, %s88
      %p97 = scmp.eq.s32.totalorder %s21, 0
      %p98 = por %p96, %p97
      %p99 = scmp.ne.s32.totalorder %s87, %s88
      %p100 = scmp.eq.s32.totalorder %s22, 1
      %p101 = por %p99, %p100
      %p103 = scmp.ne.s32.totalorder %s88, %s102
      %p104 = scmp.eq.s32.totalorder %s22, 0
      %p105 = por %p103, %p104
      %s107 = sadd.s32 %s106, 1
      %p110 = scmp.eq.s32.totalorder %s16, 1
      %p111 = scmp.ne.s32.totalorder %s106, %s108
      %p112 = scmp.eq.s32.totalorder %s16, 0
      %p113 = por %p111, %p112
      %p114 = scmp.ne.s32.totalorder %s106, %s108
      %p115 = scmp.eq.s32.totalorder %s21, 1
      %p116 = por %p114, %p115
      %p117 = scmp.ne.s32.totalorder %s108, %s109
      %p118 = scmp.eq.s32.totalorder %s21, 0
      %p119 = por %p117, %p118
      %p120 = scmp.ne.s32.totalorder %s108, %s109
      %p121 = scmp.eq.s32.totalorder %s22, 1
      %p122 = por %p120, %p121
      %p124 = scmp.ne.s32.totalorder %s109, %s123
      %p125 = scmp.eq.s32.totalorder %s22, 0
      %p126 = por %p124, %p125
      %s128 = sadd.s32 %s127, 1
      %p131 = scmp.eq.s32.totalorder %s16, 1
      %p132 = scmp.ne.s32.totalorder %s127, %s129
      %p133 = scmp.eq.s32.totalorder %s16, 0
      %p134 = por %p132, %p133
      %p135 = scmp.ne.s32.totalorder %s127, %s129
      %p136 = scmp.eq.s32.totalorder %s21, 1
      %p137 = por %p135, %p136
      %p138 = scmp.ne.s32.totalorder %s129, %s130
      %p139 = scmp.eq.s32.totalorder %s21, 0
      %p140 = por %p138, %p139
      %p141 = scmp.ne.s32.totalorder %s129, %s130
      %p142 = scmp.eq.s32.totalorder %s22, 1
      %p143 = por %p141, %p142
      %p145 = scmp.ne.s32.totalorder %s130, %s144
      %p146 = scmp.eq.s32.totalorder %s22, 0
      %p147 = por %p145, %p146
      %s148 = ssub.s32 %s23, %s35
      %p149 = scmp.eq.s32.totalorder %s148, 0
      %s151 = sadd.s32 %s150, 1
      %s152 = scalar_select %p149, %s150, %s151
      %p155 = pneg %p149
      %p156 = scmp.eq.s32.totalorder %s16, 1
      %p157 = por %p155, %p156
      %p158 = scmp.ne.s32.totalorder %s150, %s153
      %p159 = scmp.eq.s32.totalorder %s16, 0
      %p160 = por %p158, %p159
      %p161 = scmp.ne.s32.totalorder %s150, %s153
      %p162 = scmp.eq.s32.totalorder %s21, 1
      %p163 = por %p161, %p162
      %p164 = scmp.ne.s32.totalorder %s153, %s154
      %p165 = scmp.eq.s32.totalorder %s21, 0
      %p166 = por %p164, %p165
      %p167 = scmp.ne.s32.totalorder %s153, %s154
      %p168 = scmp.eq.s32.totalorder %s22, 1
      %p169 = por %p167, %p168
      %p171 = scmp.ne.s32.totalorder %s154, %s170
      %p172 = scmp.eq.s32.totalorder %s22, 0
      %p173 = por %p171, %p172
      %s174 = ssub.s32 %s23, %s35
      %p175 = scmp.eq.s32.totalorder %s174, 0
      %s177 = sadd.s32 %s176, 1
      %s178 = scalar_select %p175, %s176, %s177
      %p181 = pneg %p175
      %p182 = scmp.eq.s32.totalorder %s16, 1
      %p183 = por %p181, %p182
      %p184 = scmp.ne.s32.totalorder %s176, %s179
      %p185 = scmp.eq.s32.totalorder %s16, 0
      %p186 = por %p184, %p185
      %p187 = scmp.ne.s32.totalorder %s176, %s179
      %p188 = scmp.eq.s32.totalorder %s21, 1
      %p189 = por %p187, %p188
      %p190 = scmp.ne.s32.totalorder %s179, %s180
      %p191 = scmp.eq.s32.totalorder %s21, 0
      %p192 = por %p190, %p191
      %p193 = scmp.ne.s32.totalorder %s179, %s180
      %p194 = scmp.eq.s32.totalorder %s22, 1
      %p195 = por %p193, %p194
      %p197 = scmp.ne.s32.totalorder %s180, %s196
      %p198 = scmp.eq.s32.totalorder %s22, 0
      %p199 = por %p197, %p198
      %p200 = scmp.le.s32.totalorder 1, %s16
      %p201 = scmp.lt.s32.totalorder %s16, 3
      %p202 = pnand %p200, %p201
      %p203 = pneg %p202
      // Predicated region
      $region9: #{tpu_custom_call.1} parent=5 // pred_check
        _
      $region10: #{tpu_custom_call.1} parent=5 // pred_check_branch
        %205 = sbr.rel (%p202) target = $region12
      $region11: #{tpu_custom_call.1} parent=5 // pred_region
        %s206 = ssub.s32 %s16, 1
        // Predicated region
        $region13: #{tpu_custom_call.1} parent=11 // pred_check
          %p207 = pneg %p77
        $region14: #{tpu_custom_call.1} parent=11 // pred_check_branch
          %209 = sbr.rel (%p207) target = $region16
        $region15: #{tpu_custom_call.1} parent=11 // pred_region
          _
        $region16: #{tpu_custom_call.1} parent=11 // pred_fallthru
          _
        // Predicated region
        $region17: #{tpu_custom_call.1} parent=11 // pred_check
          %p210 = pneg %p98
        $region18: #{tpu_custom_call.1} parent=11 // pred_check_branch
          %212 = sbr.rel (%p210) target = $region20
        $region19: #{tpu_custom_call.1} parent=11 // pred_region
          _
        $region20: #{tpu_custom_call.1} parent=11 // pred_fallthru
          _
        // Predicated region
        $region21: #{tpu_custom_call.1} parent=11 // pred_check
          %p213 = pneg %p119
        $region22: #{tpu_custom_call.1} parent=11 // pred_check_branch
          %215 = sbr.rel (%p213) target = $region24
        $region23: #{tpu_custom_call.1} parent=11 // pred_region
          _
        $region24: #{tpu_custom_call.1} parent=11 // pred_fallthru
          _
        // Predicated region
        $region25: #{tpu_custom_call.1} parent=11 // pred_check
          %p216 = pneg %p140
        $region26: #{tpu_custom_call.1} parent=11 // pred_check_branch
          %218 = sbr.rel (%p216) target = $region28
        $region27: #{tpu_custom_call.1} parent=11 // pred_region
          _
        $region28: #{tpu_custom_call.1} parent=11 // pred_fallthru
          _
      $region12: #{tpu_custom_call.1} parent=5 // pred_fallthru
        _
      %p219 = scmp.lt.s32.totalorder %s16, 2
      // Predicated region
      $region29: #{tpu_custom_call.1} parent=5 // pred_check
        %p220 = pneg %p219
      $region30: #{tpu_custom_call.1} parent=5 // pred_check_branch
        %222 = sbr.rel (%p220) target = $region32
      $region31: #{tpu_custom_call.1} parent=5 // pred_region
        // Predicated region
        $region33: #{tpu_custom_call.1} parent=31 // pred_check
          %p223 = pneg %p50
        $region34: #{tpu_custom_call.1} parent=31 // pred_check_branch
          %225 = sbr.rel (%p223) target = $region36
        $region35: #{tpu_custom_call.1} parent=31 // pred_region
          %s226 = sand.u32 %s40, 1
          %s227 = scalar_lea.sflag [#allocation4], %s226
          %s228 = sand.u32 %s40, 1
          %s229 = smul.addr %s228, 8
          %s230 = scalar_lea.vmem [#allocation3], %s229
          %s231 = smul.u32 2, %s24
          %233 = vsyncadd %s227, 0
          %s234 = smul.addr %s23, 2
          %s235 = sadd.s32 %s231, %s234
          %s236 = smul.addr %s235, 4
          %s237 = scalar_lea.hbm %s0, %s236
          %s239 = sshll.u32 %s237, 4
          %s240 = int_to_ptr.hbm [resolvable:$true] %s239
          %s241 = sshll.u32 %s230, 4
          %s242 = int_to_ptr.vmem [resolvable:$true] %s241
          %244 = dma.hbm_to_vmem [thread:$0]  %s240, 128, %s242, %s227
        $region36: #{tpu_custom_call.1} parent=31 // pred_fallthru
          _
      $region32: #{tpu_custom_call.1} parent=5 // pred_fallthru
        _
      %p245 = scmp.le.s32.totalorder 1, %s16
      %p246 = scmp.lt.s32.totalorder %s16, 3
      %p247 = pnand %p245, %p246
      %p248 = pneg %p247
      // Predicated region
      $region37: #{tpu_custom_call.1} parent=5 // pred_check
        _
      $region38: #{tpu_custom_call.1} parent=5 // pred_check_branch
        %250 = sbr.rel (%p247) target = $region40
      $region39: #{tpu_custom_call.1} parent=5 // pred_region
        %s251 = ssub.s32 %s16, 1
        %s252 = sand.u32 %s43, 1
        %s253 = scalar_lea.sflag [#allocation4], %s252
        %s254 = sand.u32 %s43, 1
        %s255 = smul.addr %s254, 8
        %s256 = scalar_lea.vmem [#allocation3], %s255
        // Predicated region
        $region41: #{tpu_custom_call.1} parent=39 // pred_check
          %p257 = pneg %p56
        $region42: #{tpu_custom_call.1} parent=39 // pred_check_branch
          %259 = sbr.rel (%p257) target = $region44
        $region43: #{tpu_custom_call.1} parent=39 // pred_region
          %261 = dma.done %s253, 128
        $region44: #{tpu_custom_call.1} parent=39 // pred_fallthru
          _
        %s262 = sand.u32 %s43, 1
        %s263 = scalar_lea.sflag [#allocation4], %s262
        %s264 = sand.u32 %s43, 1
        %s265 = smul.addr %s264, 8
        %s266 = scalar_lea.vmem [#allocation3], %s265
        %p267 = pneg %p56
        %p268 = pneg %p53
        %p269 = pneg %p77
        %p270 = pneg %p74
        %p271 = pneg %p98
        %p272 = pneg %p95
        %p273 = pneg %p119
        %p274 = pneg %p116
        %p275 = pneg %p140
        %p276 = pneg %p137
        %p277 = pneg %p166
        %p278 = pneg %p163
        %p279 = scmp.lt.s32.totalorder %s25, 1
        %s280 = scalar_select %p279, %s25, 1
        %s281 = smul.addr %s280, 4
        %s282 = scalar_lea.vmem %s5, %s281
        %p283 = pneg %p192
        %p284 = pneg %p189
        %p285 = scmp.lt.s32.totalorder %s25, 1
        %s286 = scalar_select %p285, %s25, 1
        %s287 = scalar_lea.vmem %s6, %s286
        %s288 = smul.u32 2, %s26
        %p289 = scmp.lt.s32.totalorder %s25, 1
        %s290 = scalar_select %p289, %s25, 1
        %s291 = smul.addr %s290, 4
        %s292 = scalar_lea.vmem %s5, %s291
        %p293 = scmp.lt.s32.totalorder %s25, 1
        %s294 = scalar_select %p293, %s25, 1
        %s295 = scalar_lea.vmem %s6, %s294
        %p296 = scmp.eq.s32.totalorder %s26, 0
        // Predicated region
        $region45: #{tpu_custom_call.1} parent=39 // pred_check
          %p297 = pneg %p296
        $region46: #{tpu_custom_call.1} parent=39 // pred_check_branch
          %299 = sbr.rel (%p297) target = $region48
        $region47: #{tpu_custom_call.1} parent=39 // pred_region
          %vm300 = vcmask 3072
          %301 = vst.msk [vmem:[#allocation2] sm:$0xf] %vm300, 0.0
        $region48: #{tpu_custom_call.1} parent=39 // pred_fallthru
          _
        %v302 = vld [vmem:[%s256] sm:$0xff]
        %v303 = vld [vmem:[#allocation2] sm:$0xf]
        %305 = vst [vmem:[#allocation1] ss:$2 sm:$0xff] %v302
        %v306 = vld.sshfl [vmem:[#allocation1] sm:$0xff pattern:$0x75316420]
        %v307 = vld.sshfl [vmem:[#allocation1 + $0x8] sm:$0xff pattern:$0x75316420]
        %vm310 = vcmask 1043456
        %v311 = vsel %vm310, %v306, 0.0
        %v312 = vsel %vm310, %v307, 0.0
        %v313 = vadd.f32 %v311, %v312
        %314 = vadd.xlane.f32.xlu0 %v313
        %v315 = vpop.xlane.xlu0 %314
        %v316 = vadd.f32 %v303, %v315
        %vm317 = vcmask 3072
        %318 = vst.msk [vmem:[#allocation2] sm:$0xf] %vm317, %v316
        // Predicated region
        $region49: #{tpu_custom_call.1} parent=39 // pred_check
          %p319 = pneg %p296
        $region50: #{tpu_custom_call.1} parent=39 // pred_check_branch
          %321 = sbr.rel (%p319) target = $region52
        $region51: #{tpu_custom_call.1} parent=39 // pred_region
          %v322 = vld [vmem:[#allocation2] sm:$0xf]
          %v323 = vmul.f32 %v322, 0.00390625
          %v324 = vld [vmem:[%s3] sm:$0x3]
          %v325 = vld [vmem:[%s4] sm:$0x3]
          %vm326 = vcmask 31744
          %v328 = vsel %vm326, %v324, 0
          %v331 = vsel %vm310, %v323, 0
          %333 = vmatpush.msra.mxu0 0.0
          %334 = vmatpush.msra.mxu0 0.0
          %335 = vmatpush.msra.mxu0 0.0
          %336 = vmatpush.msra.mxu0 0.0
          %337 = vmatpush.msra.mxu0 0.0
          %338 = vmatpush.msra.mxu0 0.0
          %339 = vmatpush.msra.mxu0 0.0
          %340 = vmatpush.msra.mxu0 0.0
          %341 = vmatpush.msra.mxu0 0.0
          %342 = vmatpush.msra.mxu0 0.0
          %343 = vmatpush.msra.mxu0 0.0
          %344 = vmatpush.msra.mxu0 0.0
          %345 = vmatpush.msra.mxu0 0.0
          %346 = vmatpush.msra.mxu0 0.0
          %347 = vmatpush.msra.mxu0 0.0
          %348 = vmatpush.msra.mxu0 %v331
          %349 = vmatmul.f32.gmra.mxu0 %v328
          %v350 = vpop.f32.mrf.mxu0
          %v351 = vadd.f32 %v325, %v350
          %352 = vdwg.mxu0
          %v353 = vld [vmem:[%s1] sm:$0xf]
          %vm354 = vcmask 15360
          %v356 = vsel %vm354, %v353, 0
          %vm358 = vcmask 1041408
          %v360 = vsel %vm358, %v351, 0
          %362 = vmatpush.msra.mxu0 0.0
          %363 = vmatpush.msra.mxu0 0.0
          %364 = vmatpush.msra.mxu0 0.0
          %365 = vmatpush.msra.mxu0 0.0
          %366 = vmatpush.msra.mxu0 0.0
          %367 = vmatpush.msra.mxu0 0.0
          %368 = vmatpush.msra.mxu0 0.0
          %369 = vmatpush.msra.mxu0 0.0
          %370 = vmatpush.msra.mxu0 0.0
          %371 = vmatpush.msra.mxu0 0.0
          %372 = vmatpush.msra.mxu0 0.0
          %373 = vmatpush.msra.mxu0 0.0
          %374 = vmatpush.msra.mxu0 0.0
          %375 = vmatpush.msra.mxu0 0.0
          %376 = vmatpush.msra.mxu0 0.0
          %377 = vmatpush.msra.mxu0 %v360
          %378 = vmatmul.f32.gmra.mxu0 %v356
          %v379 = vpop.f32.mrf.mxu0
          %v380 = vadd.f32 0.0, %v379
          %381 = vdwg.mxu0
          %v382 = vld [vmem:[%s2] sm:$0x3]
          %v383 = vmul.f32 %v351, %v382
          %vm384 = vcmask 1024
          %v385 = vsel %vm384, %v383, 0.0
          %386 = vadd.xlane.f32.xlu0 %v385
          %v387 = vpop.xlane.xlu0 %386
          %v388 = vrot.slane %v387, 4
          %v389 = vadd.f32 %v387, %v388
          %v390 = vrot.slane %v389, 2
          %v391 = vadd.f32 %v389, %v390
          %v392 = vrot.slane %v391, 1
          %v393 = vadd.f32 %v391, %v392
          %s394 = vtos %v393
          %395 = vst.msk [vmem:[%s292] sm:$0xf] %vm317, %v380
          %v396 = vstv %s394
          %vm397 = vcmask 0
          %398 = vst.msk [vmem:[%s295] sm:$0x1] %vm397, %v396
        $region52: #{tpu_custom_call.1} parent=39 // pred_fallthru
          _
        %p399 = scmp.lt.s32.totalorder %s25, 1
        %s400 = scalar_select %p399, %s25, 1
        %s401 = smul.addr %s400, 4
        %s402 = scalar_lea.vmem %s5, %s401
        %p403 = scmp.lt.s32.totalorder %s25, 1
        %s404 = scalar_select %p403, %s25, 1
        %s405 = scalar_lea.vmem %s6, %s404
        // Predicated region
        $region53: #{tpu_custom_call.1} parent=39 // pred_check
          %p406 = pneg %p163
        $region54: #{tpu_custom_call.1} parent=39 // pred_check_branch
          %408 = sbr.rel (%p406) target = $region56
        $region55: #{tpu_custom_call.1} parent=39 // pred_region
          _
        $region56: #{tpu_custom_call.1} parent=39 // pred_fallthru
          _
        // Predicated region
        $region57: #{tpu_custom_call.1} parent=39 // pred_check
          %p409 = pneg %p189
        $region58: #{tpu_custom_call.1} parent=39 // pred_check_branch
          %411 = sbr.rel (%p409) target = $region60
        $region59: #{tpu_custom_call.1} parent=39 // pred_region
          _
        $region60: #{tpu_custom_call.1} parent=39 // pred_fallthru
          _
      $region40: #{tpu_custom_call.1} parent=5 // pred_fallthru
        _
      %p412 = scmp.le.s32.totalorder 2, %s16
      // Predicated region
      $region61: #{tpu_custom_call.1} parent=5 // pred_check
        %p413 = pneg %p412
      $region62: #{tpu_custom_call.1} parent=5 // pred_check_branch
        %415 = sbr.rel (%p413) target = $region64
      $region63: #{tpu_custom_call.1} parent=5 // pred_region
        %s416 = ssub.s32 %s16, 2
        // Predicated region
        $region65: #{tpu_custom_call.1} parent=63 // pred_check
          %p417 = pneg %p169
        $region66: #{tpu_custom_call.1} parent=63 // pred_check_branch
          %419 = sbr.rel (%p417) target = $region68
        $region67: #{tpu_custom_call.1} parent=63 // pred_region
          %p420 = scmp.lt.s32.totalorder %s27, 1
          %s421 = scalar_select %p420, %s27, 1
          %s422 = smul.addr %s421, 4
          %s423 = scalar_lea.vmem %s5, %s422
        $region68: #{tpu_custom_call.1} parent=63 // pred_fallthru
          _
        // Predicated region
        $region69: #{tpu_custom_call.1} parent=63 // pred_check
          %p424 = pneg %p195
        $region70: #{tpu_custom_call.1} parent=63 // pred_check_branch
          %426 = sbr.rel (%p424) target = $region72
        $region71: #{tpu_custom_call.1} parent=63 // pred_region
          %p427 = scmp.lt.s32.totalorder %s27, 1
          %s428 = scalar_select %p427, %s27, 1
          %s429 = scalar_lea.vmem %s6, %s428
        $region72: #{tpu_custom_call.1} parent=63 // pred_fallthru
          _
      $region64: #{tpu_custom_call.1} parent=5 // pred_fallthru
        _
    $region6: #{tpu_custom_call.1} parent=1 // loop_footer
      %s20 = sadd.s32 1, %s16
    $region7: #{tpu_custom_call.1} parent=1 // loop_footer_branch
      %15 = sbr.rel target = $region3
    $region8: #{tpu_custom_call.1} parent=1 // loop_exit
      _
    %430 = vsyncpa [#allocation4], 1
    %s431 = scalar_lea.sflag [#allocation4], 1
    %432 = vsyncpa %s431, 1

</llo_original>
